<compile_context>
chip_gen: v6e
topology: v6e:2x2x1
jax: 0.10.0
libtpu: 0.0.40
codegen_flags: <defaults>
</compile_context>

<pallas_src>
import jax
import jax.numpy as jnp
import numpy as np
from jax.experimental import pallas as pl
from jax.experimental.pallas import tpu as pltpu


def _round_up(x, m):
    return ((x + m - 1) // m) * m


def _grud_kernel(nact_ref,             # SMEM (1,) int32 : number of active steps
                 x_ref, m_ref,         # VMEM (T, Ip)    : X / Mask, time-major, lane-padded
                 wx_ref, wm_ref,       # VMEM (Ip, 3Hp)  : x / mask gate weights, cols [r|z|u]
                 bx_ref,               # VMEM (1, 3Hp)   : gate biases
                 whrz_ref,             # VMEM (Hp, 2Hp)  : [W_hr | W_hz]
                 whu_ref,              # VMEM (Hp, Hp)
                 wo_ref, bo_ref,       # VMEM (Hp, Op), (1, Op)
                 out_ref,              # VMEM (1, Op)
                 ximp_ref,             # VMEM scratch (T, Ip)  : imputed x per step
                 pre_ref):             # VMEM scratch (T, 3Hp) : batched gate pre-activations
    T, Ip = x_ref.shape
    Hp = whu_ref.shape[0]
    n_active = nact_ref[0]

    # 1) x-imputation scan (elementwise, independent of h).  Causal, so running
    #    it over all T static steps gives the correct first n_active rows.
    def imp_step(t, prex):
        m_row = m_ref[pl.ds(t, 1), :]
        xi = m_row * x_ref[pl.ds(t, 1), :] + (1.0 - m_row) * prex
        ximp_ref[pl.ds(t, 1), :] = xi
        return xi

    jax.lax.fori_loop(0, T, imp_step, jnp.zeros((1, Ip), jnp.float32))

    # 2) batched gate pre-activations: x + mask + bias, off the serial chain.
    pre_ref[...] = (
        jnp.dot(ximp_ref[...], wx_ref[...], preferred_element_type=jnp.float32)
        + jnp.dot(m_ref[...], wm_ref[...], preferred_element_type=jnp.float32)
        + bx_ref[...])

    # 3) h recurrence: only the truly serial matmuls remain per step.
    def step(t, h):
        pre = pre_ref[pl.ds(t, 1), :]                      # (1, 3Hp)
        g_rz = pre[:, :2 * Hp] + jnp.dot(h, whrz_ref[...],
                                         preferred_element_type=jnp.float32)
        r = jax.nn.sigmoid(g_rz[:, :Hp])
        z = jax.nn.sigmoid(g_rz[:, Hp:])
        u = jnp.tanh(pre[:, 2 * Hp:]
                     + jnp.dot(r * h, whu_ref[...],
                               preferred_element_type=jnp.float32))
        return (1.0 - z) * h + z * u

    h_final = jax.lax.fori_loop(0, n_active, step,
                                jnp.zeros((1, Hp), jnp.float32))

    out_ref[...] = jax.nn.sigmoid(
        jnp.dot(h_final, wo_ref[...], preferred_element_type=jnp.float32)
        + bo_ref[...])


def grud_ode_forward(X, Mask, Delta, dt, params):
    """X, Mask, Delta: (input_size, T) float32; dt: (T,) float32.
    Delta only feeds the dead gamma terms in the reference, so it never
    reaches the kernel."""
    I, T = X.shape
    H = params["W_hr"].shape[0]
    O = params["W_out"].shape[0]

    if T == 0:  # loop never runs; h stays zero
        return jax.nn.sigmoid(params["b_out"])

    Ip = _round_up(I, 128)
    Hp = _round_up(H, 128)
    Op = _round_up(O, 128)
    f32 = jnp.float32

    # time-major, lane-padded slabs (x lanes valid, rest zero)
    x_slab = jnp.zeros((T, Ip), f32).at[:, :I].set(X.T.astype(f32))
    m_slab = jnp.zeros((T, Ip), f32).at[:, :I].set(Mask.T.astype(f32))

    # input-side gate weights, columns [r | z | u], each 128-lane padded
    wx = jnp.zeros((Ip, 3 * Hp), f32)
    wx = wx.at[:I, 0:H].set(params["W_xr"].T)
    wx = wx.at[:I, Hp:Hp + H].set(params["W_xz"].T)
    wx = wx.at[:I, 2 * Hp:2 * Hp + H].set(params["W_xh"].T)

    wm = jnp.zeros((Ip, 3 * Hp), f32)
    wm = wm.at[:I, 0:H].set(params["W_mr"].T)
    wm = wm.at[:I, Hp:Hp + H].set(params["W_mz"].T)
    wm = wm.at[:I, 2 * Hp:2 * Hp + H].set(params["W_mu"].T)

    bx = jnp.zeros((1, 3 * Hp), f32)
    bx = bx.at[0, 0:H].set(params["b_xr"])
    bx = bx.at[0, Hp:Hp + H].set(params["b_xz"])
    bx = bx.at[0, 2 * Hp:2 * Hp + H].set(params["b_xh"])

    # recurrent weights
    whrz = jnp.zeros((Hp, 2 * Hp), f32)
    whrz = whrz.at[:H, 0:H].set(params["W_hr"].T)
    whrz = whrz.at[:H, Hp:Hp + H].set(params["W_hz"].T)
    whu = jnp.zeros((Hp, Hp), f32).at[:H, :H].set(params["W_hu"].T)

    # output head
    wo = jnp.zeros((Hp, Op), f32).at[:H, :O].set(params["W_out"].T)
    bo = jnp.zeros((1, Op), f32).at[0, :O].set(params["b_out"])

    # break-at-first-zero-dt: dynamic trip count of the in-kernel h-loop
    zero_mask = (dt[:T] == 0)
    n_active = jnp.where(jnp.any(zero_mask), jnp.argmax(zero_mask), T)
    n_active = n_active.astype(jnp.int32).reshape(1)

    vmem = pl.BlockSpec(memory_space=pltpu.MemorySpace.VMEM)
    smem = pl.BlockSpec(memory_space=pltpu.MemorySpace.SMEM)

    out = pl.pallas_call(
        _grud_kernel,
        out_shape=jax.ShapeDtypeStruct((1, Op), f32),
        in_specs=[smem] + [vmem] * 9,
        out_specs=vmem,
        scratch_shapes=[pltpu.VMEM((T, Ip), f32),
                        pltpu.VMEM((T, 3 * Hp), f32)],
    )(n_active, x_slab, m_slab, wx, wm, bx, whrz, whu, wo, bo)
    return out[0, :O]


def grud_ode_reference(X, Mask, Delta, dt, params):
    """Pure-JAX mirror of the PyTorch forward (dropout == 0 path)."""
    I, T = X.shape
    H = params["W_hr"].shape[0]
    h = jnp.zeros((H,), jnp.float32)
    prex = jnp.zeros((I,), jnp.float32)
    dt_host = np.asarray(dt)
    for layer in range(T):
        if dt_host[layer] == 0:
            break
        x = X[:, layer]
        m = Mask[:, layer]
        x = m * x + (1.0 - m) * prex
        r = jax.nn.sigmoid(params["W_xr"] @ x + params["b_xr"]
                           + params["W_hr"] @ h + params["W_mr"] @ m)
        z = jax.nn.sigmoid(params["W_xz"] @ x + params["b_xz"]
                           + params["W_hz"] @ h + params["W_mz"] @ m)
        u = jnp.tanh(params["W_xh"] @ x + params["b_xh"]
                     + params["W_hu"] @ (r * h) + params["W_mu"] @ m)
        h = (1.0 - z) * h + z * u
        prex = x
    return jax.nn.sigmoid(params["W_out"] @ h + params["b_out"])


if __name__ == "__main__":
    # small, forward-consistent shapes
    I, H, O, T = 32, 32, 8, 8

    names_shapes = [
        ("w_dg_x", (I,)), ("w_dg_h", (H, I)), ("b_dg_x", (I,)), ("b_dg_h", (H,)),
        ("W_xh", (H, I)), ("b_xh", (H,)),
        ("W_xz", (H, I)), ("b_xz", (H,)),
        ("W_xr", (H, I)), ("b_xr", (H,)),
        ("W_hu", (H, H)), ("W_hz", (H, H)), ("W_hr", (H, H)),
        ("W_mu", (H, I)), ("W_mz", (H, I)), ("W_mr", (H, I)),
        ("W_out", (O, H)), ("b_out", (O,)),
    ]
    key = jax.random.PRNGKey(0)
    keys = jax.random.split(key, len(names_shapes) + 3)
    # reset_parameters(): every parameter ~ Normal(0, 0.1)
    params = {n: 0.1 * jax.random.normal(keys[i], s, jnp.float32)
              for i, (n, s) in enumerate(names_shapes)}

    X = jax.random.normal(keys[-3], (I, T), jnp.float32)
    Mask = (jax.random.uniform(keys[-2], (I, T)) > 0.3).astype(jnp.float32)
    Delta = jax.random.uniform(keys[-1], (I, T), jnp.float32)
    # dt has a zero at step 6 to exercise the break-at-first-zero semantics
    dt = jnp.array([0.5, 1.0, 0.7, 0.3, 1.2, 0.9, 0.0, 0.4], jnp.float32)

    out = grud_ode_forward(X, Mask, Delta, dt, params)
    out = jax.block_until_ready(out)

    ref = grud_ode_reference(X, Mask, Delta, dt, params)
    np.testing.assert_allclose(np.asarray(out), np.asarray(ref), atol=2e-2, rtol=0)

    print("KERNEL_OK")
</pallas_src>

<mosaic_0001>
module attributes {stable_mosaic.version = 11 : i64} {
  func.func @_grud_kernel(%arg0: memref<1xi32, #tpu.memory_space<smem>>, %arg1: memref<8x128xf32, #tpu.memory_space<vmem>>, %arg2: memref<8x128xf32, #tpu.memory_space<vmem>>, %arg3: memref<128x384xf32, #tpu.memory_space<vmem>>, %arg4: memref<128x384xf32, #tpu.memory_space<vmem>>, %arg5: memref<1x384xf32, #tpu.memory_space<vmem>>, %arg6: memref<128x256xf32, #tpu.memory_space<vmem>>, %arg7: memref<128x128xf32, #tpu.memory_space<vmem>>, %arg8: memref<128x128xf32, #tpu.memory_space<vmem>>, %arg9: memref<1x128xf32, #tpu.memory_space<vmem>>, %arg10: memref<1x128xf32, #tpu.memory_space<vmem>>, %arg11: memref<8x128xf32, #tpu.memory_space<vmem>>, %arg12: memref<8x384xf32, #tpu.memory_space<vmem>>) attributes {dimension_semantics = [], scalar_prefetch = 0 : i64, scratch_operands = 2 : i64, tpu.core_type = #tpu.core_type<tc>} {
    %c0 = arith.constant 0 : index
    %0 = memref.load %arg0[%c0] : memref<1xi32, #tpu.memory_space<smem>>
    %cst = arith.constant 0.000000e+00 : f32
    %1 = vector.broadcast %cst : f32 to vector<1x128xf32>
    %c0_i32 = arith.constant 0 : i32
    %c8_i32 = arith.constant 8 : i32
    %2 = arith.addi %c0_i32, %c8_i32 : i32
    %c1_i32 = arith.constant 1 : i32
    %3 = scf.for %arg13 = %c0_i32 to %2 step %c1_i32 iter_args(%arg14 = %1) -> (vector<1x128xf32>)  : i32 {
      %29 = arith.index_cast %arg13 : i32 to index
      %c0_26 = arith.constant 0 : index
      %30 = vector.load %arg2[%29, %c0_26] : memref<8x128xf32, #tpu.memory_space<vmem>>, vector<1x128xf32>
      %31 = arith.index_cast %arg13 : i32 to index
      %c0_27 = arith.constant 0 : index
      %32 = vector.load %arg1[%31, %c0_27] : memref<8x128xf32, #tpu.memory_space<vmem>>, vector<1x128xf32>
      %33 = arith.mulf %30, %32 : vector<1x128xf32>
      %cst_28 = arith.constant 1.000000e+00 : f32
      %34 = vector.broadcast %cst_28 : f32 to vector<1x128xf32>
      %35 = arith.subf %34, %30 : vector<1x128xf32>
      %36 = arith.mulf %35, %arg14 : vector<1x128xf32>
      %37 = arith.addf %33, %36 : vector<1x128xf32>
      %38 = arith.index_cast %arg13 : i32 to index
      %c0_29 = arith.constant 0 : index
      %39 = vector.load %arg11[%38, %c0_29] : memref<8x128xf32, #tpu.memory_space<vmem>>, vector<1x128xf32>
      tpu.vector_store %arg11[%38, %c0_29], %37 {strides = array<i32>} : memref<8x128xf32, #tpu.memory_space<vmem>>, vector<1x128xf32>,
      scf.yield %37 : vector<1x128xf32>
    }
    %c8_i32_0 = arith.constant 8 : i32
    %c0_1 = arith.constant 0 : index
    %c0_2 = arith.constant 0 : index
    %4 = vector.load %arg11[%c0_1, %c0_2] : memref<8x128xf32, #tpu.memory_space<vmem>>, vector<8x128xf32>
    %c0_3 = arith.constant 0 : index
    %c0_4 = arith.constant 0 : index
    %5 = vector.load %arg3[%c0_3, %c0_4] : memref<128x384xf32, #tpu.memory_space<vmem>>, vector<128x384xf32>
    %cst_5 = arith.constant dense<0.000000e+00> : vector<8x384xf32>
    %6 = tpu.matmul %4, %5, %cst_5 {dimension_numbers = #tpu.dot_dimension_numbers<[1], [0], [0], [1], [0, 0, 1, 1], [], []>} : vector<8x128xf32>, vector<128x384xf32>, vector<8x384xf32> -> vector<8x384xf32>
    %c0_6 = arith.constant 0 : index
    %c0_7 = arith.constant 0 : index
    %7 = vector.load %arg2[%c0_6, %c0_7] : memref<8x128xf32, #tpu.memory_space<vmem>>, vector<8x128xf32>
    %c0_8 = arith.constant 0 : index
    %c0_9 = arith.constant 0 : index
    %8 = vector.load %arg4[%c0_8, %c0_9] : memref<128x384xf32, #tpu.memory_space<vmem>>, vector<128x384xf32>
    %cst_10 = arith.constant dense<0.000000e+00> : vector<8x384xf32>
    %9 = tpu.matmul %7, %8, %cst_10 {dimension_numbers = #tpu.dot_dimension_numbers<[1], [0], [0], [1], [0, 0, 1, 1], [], []>} : vector<8x128xf32>, vector<128x384xf32>, vector<8x384xf32> -> vector<8x384xf32>
    %10 = arith.addf %6, %9 : vector<8x384xf32>
    %c0_11 = arith.constant 0 : index
    %c0_12 = arith.constant 0 : index
    %11 = vector.load %arg5[%c0_11, %c0_12] : memref<1x384xf32, #tpu.memory_space<vmem>>, vector<1x384xf32>
    %12 = vector.broadcast %11 : vector<1x384xf32> to vector<8x384xf32>
    %13 = arith.addf %10, %12 : vector<8x384xf32>
    %c0_13 = arith.constant 0 : index
    %c0_14 = arith.constant 0 : index
    %14 = vector.load %arg12[%c0_13, %c0_14] : memref<8x384xf32, #tpu.memory_space<vmem>>, vector<8x384xf32>
    tpu.vector_store %arg12[%c0_13, %c0_14], %13 {strides = array<i32>} : memref<8x384xf32, #tpu.memory_space<vmem>>, vector<8x384xf32>,
    %cst_15 = arith.constant 0.000000e+00 : f32
    %15 = vector.broadcast %cst_15 : f32 to vector<1x128xf32>
    %c0_i32_16 = arith.constant 0 : i32
    %16 = arith.subi %0, %c0_i32_16 : i32
    %17 = arith.addi %c0_i32_16, %16 : i32
    %c1_i32_17 = arith.constant 1 : i32
    %18 = scf.for %arg13 = %c0_i32_16 to %17 step %c1_i32_17 iter_args(%arg14 = %15) -> (vector<1x128xf32>)  : i32 {
      %29 = arith.index_cast %arg13 : i32 to index
      %c0_26 = arith.constant 0 : index
      %30 = vector.load %arg12[%29, %c0_26] : memref<8x384xf32, #tpu.memory_space<vmem>>, vector<1x384xf32>
      %31 = vector.extract_strided_slice %30 {offsets = [0, 0], sizes = [1, 256], strides = [1, 1]} : vector<1x384xf32> to vector<1x256xf32>
      %c0_27 = arith.constant 0 : index
      %c0_28 = arith.constant 0 : index
      %32 = vector.load %arg6[%c0_27, %c0_28] : memref<128x256xf32, #tpu.memory_space<vmem>>, vector<128x256xf32>
      %cst_29 = arith.constant dense<0.000000e+00> : vector<1x256xf32>
      %33 = tpu.matmul %arg14, %32, %cst_29 {dimension_numbers = #tpu.dot_dimension_numbers<[1], [0], [0], [1], [0, 0, 1, 1], [], []>} : vector<1x128xf32>, vector<128x256xf32>, vector<1x256xf32> -> vector<1x256xf32>
      %34 = arith.addf %31, %33 : vector<1x256xf32>
      %35 = vector.extract_strided_slice %34 {offsets = [0, 0], sizes = [1, 128], strides = [1, 1]} : vector<1x256xf32> to vector<1x128xf32>
      %36 = arith.negf %35 : vector<1x128xf32>
      %37 = math.exp %36 : vector<1x128xf32>
      %cst_30 = arith.constant 1.000000e+00 : f32
      %38 = vector.broadcast %cst_30 : f32 to vector<1x128xf32>
      %39 = arith.addf %38, %37 : vector<1x128xf32>
      %40 = arith.divf %38, %39 : vector<1x128xf32>
      %41 = vector.extract_strided_slice %34 {offsets = [0, 128], sizes = [1, 128], strides = [1, 1]} : vector<1x256xf32> to vector<1x128xf32>
      %42 = arith.negf %41 : vector<1x128xf32>
      %43 = math.exp %42 : vector<1x128xf32>
      %cst_31 = arith.constant 1.000000e+00 : f32
      %44 = vector.broadcast %cst_31 : f32 to vector<1x128xf32>
      %45 = arith.addf %44, %43 : vector<1x128xf32>
      %46 = arith.divf %44, %45 : vector<1x128xf32>
      %47 = vector.extract_strided_slice %30 {offsets = [0, 256], sizes = [1, 128], strides = [1, 1]} : vector<1x384xf32> to vector<1x128xf32>
      %48 = arith.mulf %40, %arg14 : vector<1x128xf32>
      %c0_32 = arith.constant 0 : index
      %c0_33 = arith.constant 0 : index
      %49 = vector.load %arg7[%c0_32, %c0_33] : memref<128x128xf32, #tpu.memory_space<vmem>>, vector<128x128xf32>
      %cst_34 = arith.constant dense<0.000000e+00> : vector<1x128xf32>
      %50 = tpu.matmul %48, %49, %cst_34 {dimension_numbers = #tpu.dot_dimension_numbers<[1], [0], [0], [1], [0, 0, 1, 1], [], []>} : vector<1x128xf32>, vector<128x128xf32>, vector<1x128xf32> -> vector<1x128xf32>
      %51 = arith.addf %47, %50 : vector<1x128xf32>
      %52 = math.tanh %51 : vector<1x128xf32>
      %cst_35 = arith.constant 1.000000e+00 : f32
      %53 = vector.broadcast %cst_35 : f32 to vector<1x128xf32>
      %54 = arith.subf %53, %46 : vector<1x128xf32>
      %55 = arith.mulf %54, %arg14 : vector<1x128xf32>
      %56 = arith.mulf %46, %52 : vector<1x128xf32>
      %57 = arith.addf %55, %56 : vector<1x128xf32>
      scf.yield %57 : vector<1x128xf32>
    }
    %c0_18 = arith.constant 0 : index
    %c0_19 = arith.constant 0 : index
    %19 = vector.load %arg8[%c0_18, %c0_19] : memref<128x128xf32, #tpu.memory_space<vmem>>, vector<128x128xf32>
    %cst_20 = arith.constant dense<0.000000e+00> : vector<1x128xf32>
    %20 = tpu.matmul %18, %19, %cst_20 {dimension_numbers = #tpu.dot_dimension_numbers<[1], [0], [0], [1], [0, 0, 1, 1], [], []>} : vector<1x128xf32>, vector<128x128xf32>, vector<1x128xf32> -> vector<1x128xf32>
    %c0_21 = arith.constant 0 : index
    %c0_22 = arith.constant 0 : index
    %21 = vector.load %arg9[%c0_21, %c0_22] : memref<1x128xf32, #tpu.memory_space<vmem>>, vector<1x128xf32>
    %22 = arith.addf %20, %21 : vector<1x128xf32>
    %23 = arith.negf %22 : vector<1x128xf32>
    %24 = math.exp %23 : vector<1x128xf32>
    %cst_23 = arith.constant 1.000000e+00 : f32
    %25 = vector.broadcast %cst_23 : f32 to vector<1x128xf32>
    %26 = arith.addf %25, %24 : vector<1x128xf32>
    %27 = arith.divf %25, %26 : vector<1x128xf32>
    %c0_24 = arith.constant 0 : index
    %c0_25 = arith.constant 0 : index
    %28 = vector.load %arg10[%c0_24, %c0_25] : memref<1x128xf32, #tpu.memory_space<vmem>>, vector<1x128xf32>
    tpu.vector_store %arg10[%c0_24, %c0_25], %27 {strides = array<i32>} : memref<1x128xf32, #tpu.memory_space<vmem>>, vector<1x128xf32>,
    return
  }
}

</mosaic_0001>

<llo_original>
// kernel: tpu_custom_call.1
$region0: #{tpu_custom_call.1}
  #allocation0 [shape = 'u32[]', space=smem, size = 0x4, offset = 0x4, fixed_abs, tag = 'smem constant byte address 0x4 - core index']
  #allocation1 [shape = 'u32[144,128]{1,0:T(1,128)}', space=vmem, size = 0x12000, scoped, tag = 'internal scratch']
  #allocation2 [shape = 'f32[8,128]{1,0:T(8,128)}', space=vmem, size = 0x1000, scoped, tag = 'scratch operand']
  #allocation3 [shape = 'f32[8,384]{1,0:T(8,128)}', space=vmem, size = 0x3000, scoped, tag = 'scratch operand']
  #allocation4 [shape = 's32[1]{0:T(128)S(6)}', space=smem, size = 0x200, scoped, tag = 'scoped memory for tpu_custom_call.1']
  %s0 = inlined_call_operand.<no memory space> [shape: s32[1], index: 0, kind: input, shape index: {}]
  %s1 = inlined_call_operand.hbm [shape: f32[8,128], index: 1, kind: input, shape index: {}]
  %s2 = inlined_call_operand.hbm [shape: f32[8,128], index: 2, kind: input, shape index: {}]
  %s3 = inlined_call_operand.hbm [shape: f32[128,384], index: 3, kind: input, shape index: {}]
  %s4 = inlined_call_operand.hbm [shape: f32[128,384], index: 4, kind: input, shape index: {}]
  %s5 = inlined_call_operand.vmem [shape: f32[1,384], index: 5, kind: input, shape index: {}]
  %s6 = inlined_call_operand.hbm [shape: f32[128,256], index: 6, kind: input, shape index: {}]
  %s7 = inlined_call_operand.hbm [shape: f32[128,128], index: 7, kind: input, shape index: {}]
  %s8 = inlined_call_operand.hbm [shape: f32[128,128], index: 8, kind: input, shape index: {}]
  %s9 = inlined_call_operand.vmem [shape: f32[1,128], index: 9, kind: input, shape index: {}]
  %s10 = inlined_call_operand.hbm [shape: f32[1,128], index: 10, kind: output, shape index: {}]
  %s11 = sld [smem:[#allocation0]]
  $region92: #{tpu_custom_call.1} parent=0
    _
  %s13 = ssub.s32 1, %s11
  %s14 = scalar_select 0, %s13, %s11
  %15 = sst [smem:[#allocation4]] %s0
  $region1: #{tpu_custom_call.1} parent=0
    #allocation5 [shape = 'u8[4096]{0}', space=vmem, size = 0x1000, scoped, tag = 'input window, operand 1, single buffered']
    #allocation6 [shape = 's32[1]{0}', space=sflag, size = 0x4, scoped, tag = 'scoped memory for tpu_custom_call.1']
    #allocation7 [shape = 's32[1]{0}', space=sflag, size = 0x4, scoped, tag = 'scoped memory for tpu_custom_call.1']
    #allocation8 [shape = 'u8[4096]{0}', space=vmem, size = 0x1000, scoped, tag = 'input window, operand 2, single buffered']
    #allocation9 [shape = 's32[1]{0}', space=sflag, size = 0x4, scoped, tag = 'scoped memory for tpu_custom_call.1']
    #allocation10 [shape = 'u8[196608]{0}', space=vmem, size = 0x30000, scoped, tag = 'input window, operand 3, single buffered']
    #allocation11 [shape = 'u8[196608]{0}', space=vmem, size = 0x30000, scoped, tag = 'input window, operand 4, single buffered']
    #allocation12 [shape = 's32[1]{0}', space=sflag, size = 0x4, scoped, tag = 'scoped memory for tpu_custom_call.1']
    #allocation13 [shape = 'u8[131072]{0}', space=vmem, size = 0x20000, scoped, tag = 'input window, operand 6, single buffered']
    #allocation14 [shape = 'u8[65536]{0}', space=vmem, size = 0x10000, scoped, tag = 'input window, operand 7, single buffered']
    #allocation15 [shape = 's32[1]{0}', space=sflag, size = 0x4, scoped, tag = 'scoped memory for tpu_custom_call.1']
    #allocation16 [shape = 'u8[65536]{0}', space=vmem, size = 0x10000, scoped, tag = 'input window, operand 8, single buffered']
    #allocation17 [shape = 'u8[512]{0}', space=vmem, size = 0x400, scoped, tag = 'output window, operand 0, single buffered']
    %16 = vsyncpa [#allocation6], 0
    %17 = vsyncpa [#allocation9], 0
    %18 = vsyncpa [#allocation12], 0
    %19 = vsyncpa [#allocation15], 0
    %20 = vsyncpa [#allocation7], 0
    // Predicated region
    $region2: #{tpu_custom_call.1} parent=1 // pred_check
      _
    $region3: #{tpu_custom_call.1} parent=1 // pred_check_branch
      %22 = sbr.rel (0) target = $region5
    $region4: #{tpu_custom_call.1} parent=1 // pred_region
      _
    $region5: #{tpu_custom_call.1} parent=1 // pred_fallthru
      _
    // Predicated region
    $region6: #{tpu_custom_call.1} parent=1 // pred_check
      _
    $region7: #{tpu_custom_call.1} parent=1 // pred_check_branch
      %24 = sbr.rel (0) target = $region9
    $region8: #{tpu_custom_call.1} parent=1 // pred_region
      %s26 = ssub.s32 128, 128
      %27 = vsyncadd [#allocation6], %s26
      %s29 = sshll.u32 [#allocation5], 4
      %s30 = int_to_ptr.vmem [resolvable:$true] %s29
      %32 = dma.hbm_to_vmem [thread:$0]  %s1, 128, %s30, [#allocation6]
    $region9: #{tpu_custom_call.1} parent=1 // pred_fallthru
      _
    // Predicated region
    $region10: #{tpu_custom_call.1} parent=1 // pred_check
      _
    $region11: #{tpu_custom_call.1} parent=1 // pred_check_branch
      %34 = sbr.rel (0) target = $region13
    $region12: #{tpu_custom_call.1} parent=1 // pred_region
      %s36 = ssub.s32 128, 128
      %37 = vsyncadd [#allocation9], %s36
      %s39 = sshll.u32 [#allocation8], 4
      %s40 = int_to_ptr.vmem [resolvable:$true] %s39
      %42 = dma.hbm_to_vmem [thread:$0]  %s2, 128, %s40, [#allocation9]
    $region13: #{tpu_custom_call.1} parent=1 // pred_fallthru
      _
    // Predicated region
    $region14: #{tpu_custom_call.1} parent=1 // pred_check
      _
    $region15: #{tpu_custom_call.1} parent=1 // pred_check_branch
      %44 = sbr.rel (0) target = $region17
    $region16: #{tpu_custom_call.1} parent=1 // pred_region
      %s46 = ssub.s32 6144, 6144
      %47 = vsyncadd [#allocation9], %s46
      %s48 = sshll.u32 [#allocation10], 4
      %s49 = int_to_ptr.vmem [resolvable:$true] %s48
      %54 = dma.hbm_to_vmem [thread:$0]  %s3, 6144, %s49, [#allocation9], 384, 384, 24
    $region17: #{tpu_custom_call.1} parent=1 // pred_fallthru
      _
    // Predicated region
    $region18: #{tpu_custom_call.1} parent=1 // pred_check
      _
    $region19: #{tpu_custom_call.1} parent=1 // pred_check_branch
      %56 = sbr.rel (0) target = $region21
    $region20: #{tpu_custom_call.1} parent=1 // pred_region
      %s58 = ssub.s32 6144, 6144
      %59 = vsyncadd [#allocation12], %s58
      %s60 = sshll.u32 [#allocation11], 4
      %s61 = int_to_ptr.vmem [resolvable:$true] %s60
      %66 = dma.hbm_to_vmem [thread:$0]  %s4, 6144, %s61, [#allocation12], 384, 384, 24
    $region21: #{tpu_custom_call.1} parent=1 // pred_fallthru
      _
    // Predicated region
    $region22: #{tpu_custom_call.1} parent=1 // pred_check
      _
    $region23: #{tpu_custom_call.1} parent=1 // pred_check_branch
      %68 = sbr.rel (0) target = $region25
    $region24: #{tpu_custom_call.1} parent=1 // pred_region
      _
    $region25: #{tpu_custom_call.1} parent=1 // pred_fallthru
      _
    // Predicated region
    $region26: #{tpu_custom_call.1} parent=1 // pred_check
      _
    $region27: #{tpu_custom_call.1} parent=1 // pred_check_branch
      %70 = sbr.rel (0) target = $region29
    $region28: #{tpu_custom_call.1} parent=1 // pred_region
      %s72 = ssub.s32 4096, 4096
      %73 = vsyncadd [#allocation12], %s72
      %s74 = sshll.u32 [#allocation13], 4
      %s75 = int_to_ptr.vmem [resolvable:$true] %s74
      %80 = dma.hbm_to_vmem [thread:$0]  %s6, 4096, %s75, [#allocation12], 256, 256, 16
    $region29: #{tpu_custom_call.1} parent=1 // pred_fallthru
      _
    // Predicated region
    $region30: #{tpu_custom_call.1} parent=1 // pred_check
      _
    $region31: #{tpu_custom_call.1} parent=1 // pred_check_branch
      %82 = sbr.rel (0) target = $region33
    $region32: #{tpu_custom_call.1} parent=1 // pred_region
      %s84 = ssub.s32 2048, 2048
      %85 = vsyncadd [#allocation15], %s84
      %s86 = sshll.u32 [#allocation14], 4
      %s87 = int_to_ptr.vmem [resolvable:$true] %s86
      %92 = dma.hbm_to_vmem [thread:$0]  %s7, 2048, %s87, [#allocation15], 128, 128, 8
    $region33: #{tpu_custom_call.1} parent=1 // pred_fallthru
      _
    // Predicated region
    $region34: #{tpu_custom_call.1} parent=1 // pred_check
      _
    $region35: #{tpu_custom_call.1} parent=1 // pred_check_branch
      %94 = sbr.rel (0) target = $region37
    $region36: #{tpu_custom_call.1} parent=1 // pred_region
      %s96 = ssub.s32 2048, 2048
      %97 = vsyncadd [#allocation15], %s96
      %s98 = sshll.u32 [#allocation16], 4
      %s99 = int_to_ptr.vmem [resolvable:$true] %s98
      %104 = dma.hbm_to_vmem [thread:$0]  %s8, 2048, %s99, [#allocation15], 128, 128, 8
    $region37: #{tpu_custom_call.1} parent=1 // pred_fallthru
      _
    // Predicated region
    $region38: #{tpu_custom_call.1} parent=1 // pred_check
      _
    $region39: #{tpu_custom_call.1} parent=1 // pred_check_branch
      %106 = sbr.rel (0) target = $region41
    $region40: #{tpu_custom_call.1} parent=1 // pred_region
      _
    $region41: #{tpu_custom_call.1} parent=1 // pred_fallthru
      _
    // Predicated region
    $region42: #{tpu_custom_call.1} parent=1 // pred_check
      _
    $region43: #{tpu_custom_call.1} parent=1 // pred_check_branch
      %108 = sbr.rel (0) target = $region45
    $region44: #{tpu_custom_call.1} parent=1 // pred_region
      %109 = dma.done [#allocation6], 128
    $region45: #{tpu_custom_call.1} parent=1 // pred_fallthru
      _
    // Predicated region
    $region46: #{tpu_custom_call.1} parent=1 // pred_check
      _
    $region47: #{tpu_custom_call.1} parent=1 // pred_check_branch
      %111 = sbr.rel (0) target = $region49
    $region48: #{tpu_custom_call.1} parent=1 // pred_region
      %112 = dma.done [#allocation9], 128
    $region49: #{tpu_custom_call.1} parent=1 // pred_fallthru
      _
    // Predicated region
    $region50: #{tpu_custom_call.1} parent=1 // pred_check
      _
    $region51: #{tpu_custom_call.1} parent=1 // pred_check_branch
      %114 = sbr.rel (0) target = $region53
    $region52: #{tpu_custom_call.1} parent=1 // pred_region
      %115 = dma.done [#allocation9], 6144
    $region53: #{tpu_custom_call.1} parent=1 // pred_fallthru
      _
    // Predicated region
    $region54: #{tpu_custom_call.1} parent=1 // pred_check
      _
    $region55: #{tpu_custom_call.1} parent=1 // pred_check_branch
      %117 = sbr.rel (0) target = $region57
    $region56: #{tpu_custom_call.1} parent=1 // pred_region
      %118 = dma.done [#allocation12], 6144
    $region57: #{tpu_custom_call.1} parent=1 // pred_fallthru
      _
    // Predicated region
    $region58: #{tpu_custom_call.1} parent=1 // pred_check
      _
    $region59: #{tpu_custom_call.1} parent=1 // pred_check_branch
      %120 = sbr.rel (0) target = $region61
    $region60: #{tpu_custom_call.1} parent=1 // pred_region
      %121 = dma.done [#allocation12], 4096
    $region61: #{tpu_custom_call.1} parent=1 // pred_fallthru
      _
    // Predicated region
    $region62: #{tpu_custom_call.1} parent=1 // pred_check
      _
    $region63: #{tpu_custom_call.1} parent=1 // pred_check_branch
      %123 = sbr.rel (0) target = $region65
    $region64: #{tpu_custom_call.1} parent=1 // pred_region
      %124 = dma.done [#allocation15], 2048
    $region65: #{tpu_custom_call.1} parent=1 // pred_fallthru
      _
    // Predicated region
    $region66: #{tpu_custom_call.1} parent=1 // pred_check
      _
    $region67: #{tpu_custom_call.1} parent=1 // pred_check_branch
      %126 = sbr.rel (0) target = $region69
    $region68: #{tpu_custom_call.1} parent=1 // pred_region
      %127 = dma.done [#allocation15], 2048
    $region69: #{tpu_custom_call.1} parent=1 // pred_fallthru
      _
    %s128 = sld [smem:[#allocation4]]
    loop: start=0, step=1, limit=8
    $region70: #{tpu_custom_call.1} parent=1 // loop_pre_header
      _
    $region71: #{tpu_custom_call.1} parent=1 // loop_header
      %s130 = sphi 0, %s134
      %p131 = scmp.ge.s32.totalorder %s130, 8
      %v135 = vphi 0.0, %v143
    $region72: #{tpu_custom_call.1} parent=1 // loop_header_branch
      %133 = sbr.rel (%p131) target = $region76
    $region73: #{tpu_custom_call.1} parent=1 // loop_body
      %s136 = scalar_lea.vmem [#allocation8], %s130
      %v137 = vld [vmem:[%s136] sm:$0x1]
      %s138 = scalar_lea.vmem [#allocation5], %s130
      %v139 = vld [vmem:[%s138] sm:$0x1]
      %v140 = vmul.f32 %v137, %v139
      %v141 = vsub.f32 1.0, %v137
      %v142 = vmul.f32 %v141, %v135
      %v143 = vadd.f32 %v140, %v142
      %s144 = scalar_lea.vmem [#allocation2], %s130
      %145 = vst [vmem:[%s144] sm:$0x1] %v143
    $region74: #{tpu_custom_call.1} parent=1 // loop_footer
      %s134 = sadd.s32 1, %s130
    $region75: #{tpu_custom_call.1} parent=1 // loop_footer_branch
      %129 = sbr.rel target = $region71
    $region76: #{tpu_custom_call.1} parent=1 // loop_exit
      _
    %v146 = vld [vmem:[#allocation2] sm:$0xff]
    %v147 = vld [vmem:[#allocation10] sm:$0xff]
    %v148 = vld [vmem:[#allocation10 + $0x8] sm:$0xff]
    %v149 = vld [vmem:[#allocation10 + $0x10] sm:$0xff]
    %v150 = vld [vmem:[#allocation10 + $0x18] sm:$0xff]
    %v151 = vld [vmem:[#allocation10 + $0x20] sm:$0xff]
    %v152 = vld [vmem:[#allocation10 + $0x28] sm:$0xff]
    %v153 = vld [vmem:[#allocation10 + $0x30] sm:$0xff]
    %v154 = vld [vmem:[#allocation10 + $0x38] sm:$0xff]
    %v155 = vld [vmem:[#allocation10 + $0x40] sm:$0xff]
    %v156 = vld [vmem:[#allocation10 + $0x48] sm:$0xff]
    %v157 = vld [vmem:[#allocation10 + $0x50] sm:$0xff]
    %v158 = vld [vmem:[#allocation10 + $0x58] sm:$0xff]
    %v159 = vld [vmem:[#allocation10 + $0x60] sm:$0xff]
    %v160 = vld [vmem:[#allocation10 + $0x68] sm:$0xff]
    %v161 = vld [vmem:[#allocation10 + $0x70] sm:$0xff]
    %v162 = vld [vmem:[#allocation10 + $0x78] sm:$0xff]
    %v163 = vld [vmem:[#allocation10 + $0x80] sm:$0xff]
    %v164 = vld [vmem:[#allocation10 + $0x88] sm:$0xff]
    %v165 = vld [vmem:[#allocation10 + $0x90] sm:$0xff]
    %v166 = vld [vmem:[#allocation10 + $0x98] sm:$0xff]
    %v167 = vld [vmem:[#allocation10 + $0xa0] sm:$0xff]
    %v168 = vld [vmem:[#allocation10 + $0xa8] sm:$0xff]
    %v169 = vld [vmem:[#allocation10 + $0xb0] sm:$0xff]
    %v170 = vld [vmem:[#allocation10 + $0xb8] sm:$0xff]
    %v171 = vld [vmem:[#allocation10 + $0xc0] sm:$0xff]
    %v172 = vld [vmem:[#allocation10 + $0xc8] sm:$0xff]
    %v173 = vld [vmem:[#allocation10 + $0xd0] sm:$0xff]
    %v174 = vld [vmem:[#allocation10 + $0xd8] sm:$0xff]
    %v175 = vld [vmem:[#allocation10 + $0xe0] sm:$0xff]
    %v176 = vld [vmem:[#allocation10 + $0xe8] sm:$0xff]
    %v177 = vld [vmem:[#allocation10 + $0xf0] sm:$0xff]
    %v178 = vld [vmem:[#allocation10 + $0xf8] sm:$0xff]
    %v179 = vld [vmem:[#allocation10 + $0x100] sm:$0xff]
    %v180 = vld [vmem:[#allocation10 + $0x108] sm:$0xff]
    %v181 = vld [vmem:[#allocation10 + $0x110] sm:$0xff]
    %v182 = vld [vmem:[#allocation10 + $0x118] sm:$0xff]
    %v183 = vld [vmem:[#allocation10 + $0x120] sm:$0xff]
    %v184 = vld [vmem:[#allocation10 + $0x128] sm:$0xff]
    %v185 = vld [vmem:[#allocation10 + $0x130] sm:$0xff]
    %v186 = vld [vmem:[#allocation10 + $0x138] sm:$0xff]
    %v187 = vld [vmem:[#allocation10 + $0x140] sm:$0xff]
    %v188 = vld [vmem:[#allocation10 + $0x148] sm:$0xff]
    %v189 = vld [vmem:[#allocation10 + $0x150] sm:$0xff]
    %v190 = vld [vmem:[#allocation10 + $0x158] sm:$0xff]
    %v191 = vld [vmem:[#allocation10 + $0x160] sm:$0xff]
    %v192 = vld [vmem:[#allocation10 + $0x168] sm:$0xff]
    %v193 = vld [vmem:[#allocation10 + $0x170] sm:$0xff]
    %v194 = vld [vmem:[#allocation10 + $0x178] sm:$0xff]
    %v195 = vld [vmem:[#allocation8] sm:$0xff]
    %v196 = vld [vmem:[#allocation11] sm:$0xff]
    %v197 = vld [vmem:[#allocation11 + $0x8] sm:$0xff]
    %v198 = vld [vmem:[#allocation11 + $0x10] sm:$0xff]
    %v199 = vld [vmem:[#allocation11 + $0x18] sm:$0xff]
    %v200 = vld [vmem:[#allocation11 + $0x20] sm:$0xff]
    %v201 = vld [vmem:[#allocation11 + $0x28] sm:$0xff]
    %v202 = vld [vmem:[#allocation11 + $0x30] sm:$0xff]
    %v203 = vld [vmem:[#allocation11 + $0x38] sm:$0xff]
    %v204 = vld [vmem:[#allocation11 + $0x40] sm:$0xff]
    %v205 = vld [vmem:[#allocation11 + $0x48] sm:$0xff]
    %v206 = vld [vmem:[#allocation11 + $0x50] sm:$0xff]
    %v207 = vld [vmem:[#allocation11 + $0x58] sm:$0xff]
    %v208 = vld [vmem:[#allocation11 + $0x60] sm:$0xff]
    %v209 = vld [vmem:[#allocation11 + $0x68] sm:$0xff]
    %v210 = vld [vmem:[#allocation11 + $0x70] sm:$0xff]
    %v211 = vld [vmem:[#allocation11 + $0x78] sm:$0xff]
    %v212 = vld [vmem:[#allocation11 + $0x80] sm:$0xff]
    %v213 = vld [vmem:[#allocation11 + $0x88] sm:$0xff]
    %v214 = vld [vmem:[#allocation11 + $0x90] sm:$0xff]
    %v215 = vld [vmem:[#allocation11 + $0x98] sm:$0xff]
    %v216 = vld [vmem:[#allocation11 + $0xa0] sm:$0xff]
    %v217 = vld [vmem:[#allocation11 + $0xa8] sm:$0xff]
    %v218 = vld [vmem:[#allocation11 + $0xb0] sm:$0xff]
    %v219 = vld [vmem:[#allocation11 + $0xb8] sm:$0xff]
    %v220 = vld [vmem:[#allocation11 + $0xc0] sm:$0xff]
    %v221 = vld [vmem:[#allocation11 + $0xc8] sm:$0xff]
    %v222 = vld [vmem:[#allocation11 + $0xd0] sm:$0xff]
    %v223 = vld [vmem:[#allocation11 + $0xd8] sm:$0xff]
    %v224 = vld [vmem:[#allocation11 + $0xe0] sm:$0xff]
    %v225 = vld [vmem:[#allocation11 + $0xe8] sm:$0xff]
    %v226 = vld [vmem:[#allocation11 + $0xf0] sm:$0xff]
    %v227 = vld [vmem:[#allocation11 + $0xf8] sm:$0xff]
    %v228 = vld [vmem:[#allocation11 + $0x100] sm:$0xff]
    %v229 = vld [vmem:[#allocation11 + $0x108] sm:$0xff]
    %v230 = vld [vmem:[#allocation11 + $0x110] sm:$0xff]
    %v231 = vld [vmem:[#allocation11 + $0x118] sm:$0xff]
    %v232 = vld [vmem:[#allocation11 + $0x120] sm:$0xff]
    %v233 = vld [vmem:[#allocation11 + $0x128] sm:$0xff]
    %v234 = vld [vmem:[#allocation11 + $0x130] sm:$0xff]
    %v235 = vld [vmem:[#allocation11 + $0x138] sm:$0xff]
    %v236 = vld [vmem:[#allocation11 + $0x140] sm:$0xff]
    %v237 = vld [vmem:[#allocation11 + $0x148] sm:$0xff]
    %v238 = vld [vmem:[#allocation11 + $0x150] sm:$0xff]
    %v239 = vld [vmem:[#allocation11 + $0x158] sm:$0xff]
    %v240 = vld [vmem:[#allocation11 + $0x160] sm:$0xff]
    %v241 = vld [vmem:[#allocation11 + $0x168] sm:$0xff]
    %v242 = vld [vmem:[#allocation11 + $0x170] sm:$0xff]
    %v243 = vld [vmem:[#allocation11 + $0x178] sm:$0xff]
    %244 = vmatprep.subr.mxu0 %v242
    %245 = vmatpush1.msra.mxu0 %v241
    %246 = vmatprep.subr.mxu0 %v239
    %247 = vmatpush1.msra.mxu0 %v238
    %248 = vmatprep.subr.mxu0 %v236
    %249 = vmatpush1.msra.mxu0 %v235
    %250 = vmatprep.subr.mxu0 %v233
    %251 = vmatpush1.msra.mxu0 %v232
    %252 = vmatprep.subr.mxu0 %v230
    %253 = vmatpush1.msra.mxu0 %v229
    %254 = vmatprep.subr.mxu0 %v227
    %255 = vmatpush1.msra.mxu0 %v226
    %256 = vmatprep.subr.mxu0 %v224
    %257 = vmatpush1.msra.mxu0 %v223
    %258 = vmatprep.subr.mxu0 %v221
    %259 = vmatpush1.msra.mxu0 %v220
    %260 = vmatprep.subr.mxu0 %v218
    %261 = vmatpush1.msra.mxu0 %v217
    %262 = vmatprep.subr.mxu0 %v215
    %263 = vmatpush1.msra.mxu0 %v214
    %264 = vmatprep.subr.mxu0 %v212
    %265 = vmatpush1.msra.mxu0 %v211
    %266 = vmatprep.subr.mxu0 %v209
    %267 = vmatpush1.msra.mxu0 %v208
    %268 = vmatprep.subr.mxu0 %v206
    %269 = vmatpush1.msra.mxu0 %v205
    %270 = vmatprep.subr.mxu0 %v203
    %271 = vmatpush1.msra.mxu0 %v202
    %272 = vmatprep.subr.mxu0 %v200
    %273 = vmatpush1.msra.mxu0 %v199
    %274 = vmatprep.subr.mxu0 %v197
    %275 = vmatpush1.msra.mxu0 %v196
    %276 = vmatprep.subr.mxu0 0.0
    %277 = vmatpush2.msra.mxu0 0.0
    %278 = vmatprep.subr.mxu0 0.0
    %279 = vmatpush2.msra.mxu0 0.0
    %280 = vmatprep.subr.mxu0 0.0
    %281 = vmatpush2.msra.mxu0 0.0
    %282 = vmatprep.subr.mxu0 0.0
    %283 = vmatpush2.msra.mxu0 0.0
    %284 = vmatprep.subr.mxu0 0.0
    %285 = vmatpush2.msra.mxu0 0.0
    %286 = vmatprep.subr.mxu0 0.0
    %287 = vmatpush2.msra.mxu0 0.0
    %288 = vmatprep.subr.mxu0 0.0
    %289 = vmatpush2.msra.mxu0 0.0
    %290 = vmatprep.subr.mxu0 0.0
    %291 = vmatpush2.msra.mxu0 0.0
    %292 = vmatprep.subr.mxu0 0.0
    %293 = vmatpush2.msra.mxu0 0.0
    %294 = vmatprep.subr.mxu0 0.0
    %295 = vmatpush2.msra.mxu0 0.0
    %296 = vmatprep.subr.mxu0 0.0
    %297 = vmatpush2.msra.mxu0 0.0
    %298 = vmatprep.subr.mxu0 0.0
    %299 = vmatpush2.msra.mxu0 0.0
    %300 = vmatprep.subr.mxu0 0.0
    %301 = vmatpush2.msra.mxu0 0.0
    %302 = vmatprep.subr.mxu0 0.0
    %303 = vmatpush2.msra.mxu0 0.0
    %304 = vmatprep.subr.mxu0 0.0
    %305 = vmatpush2.msra.mxu0 0.0
    %306 = vmatprep.subr.mxu0 0.0
    %307 = vmatpush2.msra.mxu0 0.0
    %308 = vmatprep.mubr.f32.mxu0 0.0
    %309 = vmatmul.mubr.f32.gmra.mxu0 %v195
    %v310 = vpop.f32.mrf.mxu0
    %v311 = vadd.f32 0.0, %v310
    %v312 = vpop.f32.mrf.mxu0
    %v313 = vadd.f32 0.0, %v312
    %314 = vdwg.mxu0
    %315 = vmatprep.subr.mxu0 0.0
    %316 = vmatpush1.msra.mxu0 %v243
    %317 = vmatprep.subr.mxu0 0.0
    %318 = vmatpush1.msra.mxu0 %v240
    %319 = vmatprep.subr.mxu0 0.0
    %320 = vmatpush1.msra.mxu0 %v237
    %321 = vmatprep.subr.mxu0 0.0
    %322 = vmatpush1.msra.mxu0 %v234
    %323 = vmatprep.subr.mxu0 0.0
    %324 = vmatpush1.msra.mxu0 %v231
    %325 = vmatprep.subr.mxu0 0.0
    %326 = vmatpush1.msra.mxu0 %v228
    %327 = vmatprep.subr.mxu0 0.0
    %328 = vmatpush1.msra.mxu0 %v225
    %329 = vmatprep.subr.mxu0 0.0
    %330 = vmatpush1.msra.mxu0 %v222
    %331 = vmatprep.subr.mxu0 0.0
    %332 = vmatpush1.msra.mxu0 %v219
    %333 = vmatprep.subr.mxu0 0.0
    %334 = vmatpush1.msra.mxu0 %v216
    %335 = vmatprep.subr.mxu0 0.0
    %336 = vmatpush1.msra.mxu0 %v213
    %337 = vmatprep.subr.mxu0 0.0
    %338 = vmatpush1.msra.mxu0 %v210
    %339 = vmatprep.subr.mxu0 0.0
    %340 = vmatpush1.msra.mxu0 %v207
    %341 = vmatprep.subr.mxu0 0.0
    %342 = vmatpush1.msra.mxu0 %v204
    %343 = vmatprep.subr.mxu0 0.0
    %344 = vmatpush1.msra.mxu0 %v201
    %345 = vmatprep.subr.mxu0 0.0
    %346 = vmatpush1.msra.mxu0 %v198
    %347 = vmatprep.subr.mxu0 0.0
    %348 = vmatpush2.msra.mxu0 0.0
    %349 = vmatprep.subr.mxu0 0.0
    %350 = vmatpush2.msra.mxu0 0.0
    %351 = vmatprep.subr.mxu0 0.0
    %352 = vmatpush2.msra.mxu0 0.0
    %353 = vmatprep.subr.mxu0 0.0
    %354 = vmatpush2.msra.mxu0 0.0
    %355 = vmatprep.subr.mxu0 0.0
    %356 = vmatpush2.msra.mxu0 0.0
    %357 = vmatprep.subr.mxu0 0.0
    %358 = vmatpush2.msra.mxu0 0.0
    %359 = vmatprep.subr.mxu0 0.0
    %360 = vmatpush2.msra.mxu0 0.0
    %361 = vmatprep.subr.mxu0 0.0
    %362 = vmatpush2.msra.mxu0 0.0
    %363 = vmatprep.subr.mxu0 0.0
    %364 = vmatpush2.msra.mxu0 0.0
    %365 = vmatprep.subr.mxu0 0.0
    %366 = vmatpush2.msra.mxu0 0.0
    %367 = vmatprep.subr.mxu0 0.0
    %368 = vmatpush2.msra.mxu0 0.0
    %369 = vmatprep.subr.mxu0 0.0
    %370 = vmatpush2.msra.mxu0 0.0
    %371 = vmatprep.subr.mxu0 0.0
    %372 = vmatpush2.msra.mxu0 0.0
    %373 = vmatprep.subr.mxu0 0.0
    %374 = vmatpush2.msra.mxu0 0.0
    %375 = vmatprep.subr.mxu0 0.0
    %376 = vmatpush2.msra.mxu0 0.0
    %377 = vmatprep.subr.mxu0 0.0
    %378 = vmatpush2.msra.mxu0 0.0
    %379 = vmatprep.mubr.f32.mxu0 0.0
    %380 = vmatmul.mubr.f32.gmra.mxu0 %v195
    %v381 = vpop.f32.mrf.mxu0
    %v382 = vadd.f32 0.0, %v381
    %v383 = vpop.f32.mrf.mxu0
    %384 = vdwg.mxu0
    %385 = vmatprep.subr.mxu0 %v193
    %386 = vmatpush1.msra.mxu0 %v192
    %387 = vmatprep.subr.mxu0 %v190
    %388 = vmatpush1.msra.mxu0 %v189
    %389 = vmatprep.subr.mxu0 %v187
    %390 = vmatpush1.msra.mxu0 %v186
    %391 = vmatprep.subr.mxu0 %v184
    %392 = vmatpush1.msra.mxu0 %v183
    %393 = vmatprep.subr.mxu0 %v181
    %394 = vmatpush1.msra.mxu0 %v180
    %395 = vmatprep.subr.mxu0 %v178
    %396 = vmatpush1.msra.mxu0 %v177
    %397 = vmatprep.subr.mxu0 %v175
    %398 = vmatpush1.msra.mxu0 %v174
    %399 = vmatprep.subr.mxu0 %v172
    %400 = vmatpush1.msra.mxu0 %v171
    %401 = vmatprep.subr.mxu0 %v169
    %402 = vmatpush1.msra.mxu0 %v168
    %403 = vmatprep.subr.mxu0 %v166
    %404 = vmatpush1.msra.mxu0 %v165
    %405 = vmatprep.subr.mxu0 %v163
    %406 = vmatpush1.msra.mxu0 %v162
    %407 = vmatprep.subr.mxu0 %v160
    %408 = vmatpush1.msra.mxu0 %v159
    %409 = vmatprep.subr.mxu0 %v157
    %410 = vmatpush1.msra.mxu0 %v156
    %411 = vmatprep.subr.mxu0 %v154
    %412 = vmatpush1.msra.mxu0 %v153
    %413 = vmatprep.subr.mxu0 %v151
    %414 = vmatpush1.msra.mxu0 %v150
    %415 = vmatprep.subr.mxu0 %v148
    %416 = vmatpush1.msra.mxu0 %v147
    %417 = vmatprep.subr.mxu0 0.0
    %418 = vmatpush2.msra.mxu0 0.0
    %419 = vmatprep.subr.mxu0 0.0
    %420 = vmatpush2.msra.mxu0 0.0
    %421 = vmatprep.subr.mxu0 0.0
    %422 = vmatpush2.msra.mxu0 0.0
    %423 = vmatprep.subr.mxu0 0.0
    %424 = vmatpush2.msra.mxu0 0.0
    %425 = vmatprep.subr.mxu0 0.0
    %426 = vmatpush2.msra.mxu0 0.0
    %427 = vmatprep.subr.mxu0 0.0
    %428 = vmatpush2.msra.mxu0 0.0
    %429 = vmatprep.subr.mxu0 0.0
    %430 = vmatpush2.msra.mxu0 0.0
    %431 = vmatprep.subr.mxu0 0.0
    %432 = vmatpush2.msra.mxu0 0.0
    %433 = vmatprep.subr.mxu0 0.0
    %434 = vmatpush2.msra.mxu0 0.0
    %435 = vmatprep.subr.mxu0 0.0
    %436 = vmatpush2.msra.mxu0 0.0
    %437 = vmatprep.subr.mxu0 0.0
    %438 = vmatpush2.msra.mxu0 0.0
    %439 = vmatprep.subr.mxu0 0.0
    %440 = vmatpush2.msra.mxu0 0.0
    %441 = vmatprep.subr.mxu0 0.0
    %442 = vmatpush2.msra.mxu0 0.0
    %443 = vmatprep.subr.mxu0 0.0
    %444 = vmatpush2.msra.mxu0 0.0
    %445 = vmatprep.subr.mxu0 0.0
    %446 = vmatpush2.msra.mxu0 0.0
    %447 = vmatprep.subr.mxu0 0.0
    %448 = vmatpush2.msra.mxu0 0.0
    %449 = vmatprep.mubr.f32.mxu0 0.0
    %450 = vmatmul.mubr.f32.gmra.mxu0 %v146
    %v451 = vpop.f32.mrf.mxu0
    %v452 = vadd.f32 %v311, %v451
    %v453 = vpop.f32.mrf.mxu0
    %v454 = vadd.f32 %v313, %v453
    %455 = vdwg.mxu0
    %456 = vmatprep.subr.mxu0 0.0
    %457 = vmatpush1.msra.mxu0 %v194
    %458 = vmatprep.subr.mxu0 0.0
    %459 = vmatpush1.msra.mxu0 %v191
    %460 = vmatprep.subr.mxu0 0.0
    %461 = vmatpush1.msra.mxu0 %v188
    %462 = vmatprep.subr.mxu0 0.0
    %463 = vmatpush1.msra.mxu0 %v185
    %464 = vmatprep.subr.mxu0 0.0
    %465 = vmatpush1.msra.mxu0 %v182
    %466 = vmatprep.subr.mxu0 0.0
    %467 = vmatpush1.msra.mxu0 %v179
    %468 = vmatprep.subr.mxu0 0.0
    %469 = vmatpush1.msra.mxu0 %v176
    %470 = vmatprep.subr.mxu0 0.0
    %471 = vmatpush1.msra.mxu0 %v173
    %472 = vmatprep.subr.mxu0 0.0
    %473 = vmatpush1.msra.mxu0 %v170
    %474 = vmatprep.subr.mxu0 0.0
    %475 = vmatpush1.msra.mxu0 %v167
    %476 = vmatprep.subr.mxu0 0.0
    %477 = vmatpush1.msra.mxu0 %v164
    %478 = vmatprep.subr.mxu0 0.0
    %479 = vmatpush1.msra.mxu0 %v161
    %480 = vmatprep.subr.mxu0 0.0
    %481 = vmatpush1.msra.mxu0 %v158
    %482 = vmatprep.subr.mxu0 0.0
    %483 = vmatpush1.msra.mxu0 %v155
    %484 = vmatprep.subr.mxu0 0.0
    %485 = vmatpush1.msra.mxu0 %v152
    %486 = vmatprep.subr.mxu0 0.0
    %487 = vmatpush1.msra.mxu0 %v149
    %488 = vmatprep.subr.mxu0 0.0
    %489 = vmatpush2.msra.mxu0 0.0
    %490 = vmatprep.subr.mxu0 0.0
    %491 = vmatpush2.msra.mxu0 0.0
    %492 = vmatprep.subr.mxu0 0.0
    %493 = vmatpush2.msra.mxu0 0.0
    %494 = vmatprep.subr.mxu0 0.0
    %495 = vmatpush2.msra.mxu0 0.0
    %496 = vmatprep.subr.mxu0 0.0
    %497 = vmatpush2.msra.mxu0 0.0
    %498 = vmatprep.subr.mxu0 0.0
    %499 = vmatpush2.msra.mxu0 0.0
    %500 = vmatprep.subr.mxu0 0.0
    %501 = vmatpush2.msra.mxu0 0.0
    %502 = vmatprep.subr.mxu0 0.0
    %503 = vmatpush2.msra.mxu0 0.0
    %504 = vmatprep.subr.mxu0 0.0
    %505 = vmatpush2.msra.mxu0 0.0
    %506 = vmatprep.subr.mxu0 0.0
    %507 = vmatpush2.msra.mxu0 0.0
    %508 = vmatprep.subr.mxu0 0.0
    %509 = vmatpush2.msra.mxu0 0.0
    %510 = vmatprep.subr.mxu0 0.0
    %511 = vmatpush2.msra.mxu0 0.0
    %512 = vmatprep.subr.mxu0 0.0
    %513 = vmatpush2.msra.mxu0 0.0
    %514 = vmatprep.subr.mxu0 0.0
    %515 = vmatpush2.msra.mxu0 0.0
    %516 = vmatprep.subr.mxu0 0.0
    %517 = vmatpush2.msra.mxu0 0.0
    %518 = vmatprep.subr.mxu0 0.0
    %519 = vmatpush2.msra.mxu0 0.0
    %520 = vmatprep.mubr.f32.mxu0 0.0
    %521 = vmatmul.mubr.f32.gmra.mxu0 %v146
    %v522 = vpop.f32.mrf.mxu0
    %v523 = vadd.f32 %v382, %v522
    %v524 = vpop.f32.mrf.mxu0
    %525 = vdwg.mxu0
    %v526 = vld [vmem:[%s5] sm:$0x7]
    %v528 = vlaneseq
    %v529 = vshrl.u32 %v528, 7
    %v530 = vsub.s32 0, %v529
    %v531 = vrot.slane %v526, %v530
    %v532 = vlaneseq
    %v533 = vshrl.u32 %v532, 7
    %v534 = vsub.s32 1, %v533
    %v535 = vrot.slane %v526, %v534
    %v536 = vlaneseq
    %v537 = vshrl.u32 %v536, 7
    %v538 = vsub.s32 2, %v537
    %v539 = vrot.slane %v526, %v538
    %v543 = vadd.f32 %v452, %v531
    %v544 = vadd.f32 %v454, %v535
    %v545 = vadd.f32 %v523, %v539
    %546 = vst [vmem:[#allocation3] sm:$0xff] %v543
    %547 = vst [vmem:[#allocation3 + $0x8] sm:$0xff] %v544
    %548 = vst [vmem:[#allocation3 + $0x10] sm:$0xff] %v545
    // While loop
    $region77: #{tpu_custom_call.1} parent=1 // loop_pre_header
      _
    $region78: #{tpu_custom_call.1} parent=1 // loop_header
      %s550 = sphi 0, %s552
      %p551 = scmp.ge.s32.totalorder %s550, %s128
      %v555 = vphi 0.0, %v797
    $region79: #{tpu_custom_call.1} parent=1 // loop_header_branch
      %554 = sbr.rel (%p551) target = $region83
    $region80: #{tpu_custom_call.1} parent=1 // loop_body
      %s556 = sshra.s32 %s550, 3
      %s557 = sand.u32 %s550, 7
      %s558 = sshra.s32 %s550, 3
      %s559 = sand.u32 %s550, 7
      %s560 = smul.u32 %s556, 3
      %s561 = smul.u32 %s560, 8
      %s562 = sadd.s32 %s561, %s559
      %s563 = scalar_lea.vmem [#allocation3], %s562
      %v564 = vld [vmem:[%s563] ss:$8 sm:$0x7]
      %v565 = vld [vmem:[#allocation13] sm:$0xff]
      %v566 = vld [vmem:[#allocation13 + $0x8] sm:$0xff]
      %v567 = vld [vmem:[#allocation13 + $0x10] sm:$0xff]
      %v568 = vld [vmem:[#allocation13 + $0x18] sm:$0xff]
      %v569 = vld [vmem:[#allocation13 + $0x20] sm:$0xff]
      %v570 = vld [vmem:[#allocation13 + $0x28] sm:$0xff]
      %v571 = vld [vmem:[#allocation13 + $0x30] sm:$0xff]
      %v572 = vld [vmem:[#allocation13 + $0x38] sm:$0xff]
      %v573 = vld [vmem:[#allocation13 + $0x40] sm:$0xff]
      %v574 = vld [vmem:[#allocation13 + $0x48] sm:$0xff]
      %v575 = vld [vmem:[#allocation13 + $0x50] sm:$0xff]
      %v576 = vld [vmem:[#allocation13 + $0x58] sm:$0xff]
      %v577 = vld [vmem:[#allocation13 + $0x60] sm:$0xff]
      %v578 = vld [vmem:[#allocation13 + $0x68] sm:$0xff]
      %v579 = vld [vmem:[#allocation13 + $0x70] sm:$0xff]
      %v580 = vld [vmem:[#allocation13 + $0x78] sm:$0xff]
      %v581 = vld [vmem:[#allocation13 + $0x80] sm:$0xff]
      %v582 = vld [vmem:[#allocation13 + $0x88] sm:$0xff]
      %v583 = vld [vmem:[#allocation13 + $0x90] sm:$0xff]
      %v584 = vld [vmem:[#allocation13 + $0x98] sm:$0xff]
      %v585 = vld [vmem:[#allocation13 + $0xa0] sm:$0xff]
      %v586 = vld [vmem:[#allocation13 + $0xa8] sm:$0xff]
      %v587 = vld [vmem:[#allocation13 + $0xb0] sm:$0xff]
      %v588 = vld [vmem:[#allocation13 + $0xb8] sm:$0xff]
      %v589 = vld [vmem:[#allocation13 + $0xc0] sm:$0xff]
      %v590 = vld [vmem:[#allocation13 + $0xc8] sm:$0xff]
      %v591 = vld [vmem:[#allocation13 + $0xd0] sm:$0xff]
      %v592 = vld [vmem:[#allocation13 + $0xd8] sm:$0xff]
      %v593 = vld [vmem:[#allocation13 + $0xe0] sm:$0xff]
      %v594 = vld [vmem:[#allocation13 + $0xe8] sm:$0xff]
      %v595 = vld [vmem:[#allocation13 + $0xf0] sm:$0xff]
      %v596 = vld [vmem:[#allocation13 + $0xf8] sm:$0xff]
      %597 = vmatprep.subr.mxu0 %v596
      %598 = vmatpush1.msra.mxu0 %v595
      %599 = vmatprep.subr.mxu0 %v594
      %600 = vmatpush1.msra.mxu0 %v593
      %601 = vmatprep.subr.mxu0 %v592
      %602 = vmatpush1.msra.mxu0 %v591
      %603 = vmatprep.subr.mxu0 %v590
      %604 = vmatpush1.msra.mxu0 %v589
      %605 = vmatprep.subr.mxu0 %v588
      %606 = vmatpush1.msra.mxu0 %v587
      %607 = vmatprep.subr.mxu0 %v586
      %608 = vmatpush1.msra.mxu0 %v585
      %609 = vmatprep.subr.mxu0 %v584
      %610 = vmatpush1.msra.mxu0 %v583
      %611 = vmatprep.subr.mxu0 %v582
      %612 = vmatpush1.msra.mxu0 %v581
      %613 = vmatprep.subr.mxu0 %v580
      %614 = vmatpush1.msra.mxu0 %v579
      %615 = vmatprep.subr.mxu0 %v578
      %616 = vmatpush1.msra.mxu0 %v577
      %617 = vmatprep.subr.mxu0 %v576
      %618 = vmatpush1.msra.mxu0 %v575
      %619 = vmatprep.subr.mxu0 %v574
      %620 = vmatpush1.msra.mxu0 %v573
      %621 = vmatprep.subr.mxu0 %v572
      %622 = vmatpush1.msra.mxu0 %v571
      %623 = vmatprep.subr.mxu0 %v570
      %624 = vmatpush1.msra.mxu0 %v569
      %625 = vmatprep.subr.mxu0 %v568
      %626 = vmatpush1.msra.mxu0 %v567
      %627 = vmatprep.subr.mxu0 %v566
      %628 = vmatpush1.msra.mxu0 %v565
      %629 = vmatprep.subr.mxu0 0.0
      %630 = vmatpush2.msra.mxu0 0.0
      %631 = vmatprep.subr.mxu0 0.0
      %632 = vmatpush2.msra.mxu0 0.0
      %633 = vmatprep.subr.mxu0 0.0
      %634 = vmatpush2.msra.mxu0 0.0
      %635 = vmatprep.subr.mxu0 0.0
      %636 = vmatpush2.msra.mxu0 0.0
      %637 = vmatprep.subr.mxu0 0.0
      %638 = vmatpush2.msra.mxu0 0.0
      %639 = vmatprep.subr.mxu0 0.0
      %640 = vmatpush2.msra.mxu0 0.0
      %641 = vmatprep.subr.mxu0 0.0
      %642 = vmatpush2.msra.mxu0 0.0
      %643 = vmatprep.subr.mxu0 0.0
      %644 = vmatpush2.msra.mxu0 0.0
      %645 = vmatprep.subr.mxu0 0.0
      %646 = vmatpush2.msra.mxu0 0.0
      %647 = vmatprep.subr.mxu0 0.0
      %648 = vmatpush2.msra.mxu0 0.0
      %649 = vmatprep.subr.mxu0 0.0
      %650 = vmatpush2.msra.mxu0 0.0
      %651 = vmatprep.subr.mxu0 0.0
      %652 = vmatpush2.msra.mxu0 0.0
      %653 = vmatprep.subr.mxu0 0.0
      %654 = vmatpush2.msra.mxu0 0.0
      %655 = vmatprep.subr.mxu0 0.0
      %656 = vmatpush2.msra.mxu0 0.0
      %657 = vmatprep.subr.mxu0 0.0
      %658 = vmatpush2.msra.mxu0 0.0
      %659 = vmatprep.subr.mxu0 0.0
      %660 = vmatpush2.msra.mxu0 0.0
      %661 = vmatprep.mubr.f32.mxu0 0.0
      %662 = vmatmul.mubr.f32.gmra.mxu0 %v555
      %v663 = vpop.f32.mrf.mxu0
      %v664 = vadd.f32 0.0, %v663
      %v665 = vpop.f32.mrf.mxu0
      %v666 = vadd.f32 0.0, %v665
      %667 = vdwg.mxu0
      %v670 = vcombine.low %v664, %v666
      %v672 = vunpack.c.l.s4 1966171168
      %v673 = vunpack.c.0.s8 %v672
      %v674 = vlaneseq
      %v675 = vshrl.u32 %v674, 7
      %v676 = vsub.s32 %v673, %v675
      %v677 = vrot.slane %v670, %v676
      %v679 = vunpack.c.l.s4 1966171168
      %v680 = vunpack.c.0.s8 %v679
      %v681 = vlaneseq
      %v682 = vshrl.u32 %v681, 7
      %v683 = vsub.s32 %v680, %v682
      %v684 = vrot.slane %v677, %v683
      %v686 = vadd.f32 %v564, %v684
      %v687 = vxor.u32 %v686, 2147483648
      %v688 = vmul.f32 %v687, 1.442695
      %v689 = vpow.pop %v688
      %v690 = vadd.f32 %v689, 1.0
      %v691 = vrcp.pop %v690
      %v692 = vmul.f32 1.0, %v691
      %v694 = vrot.slane %v686, 1
      %v696 = vxor.u32 %v694, 2147483648
      %v697 = vmul.f32 %v696, 1.442695
      %v698 = vpow.pop %v697
      %v699 = vadd.f32 %v698, 1.0
      %v700 = vrcp.pop %v699
      %v701 = vmul.f32 1.0, %v700
      %v702 = vmul.f32 %v692, %v555
      %v703 = vld [vmem:[#allocation14] sm:$0xff]
      %v704 = vld [vmem:[#allocation14 + $0x8] sm:$0xff]
      %v705 = vld [vmem:[#allocation14 + $0x10] sm:$0xff]
      %v706 = vld [vmem:[#allocation14 + $0x18] sm:$0xff]
      %v707 = vld [vmem:[#allocation14 + $0x20] sm:$0xff]
      %v708 = vld [vmem:[#allocation14 + $0x28] sm:$0xff]
      %v709 = vld [vmem:[#allocation14 + $0x30] sm:$0xff]
      %v710 = vld [vmem:[#allocation14 + $0x38] sm:$0xff]
      %v711 = vld [vmem:[#allocation14 + $0x40] sm:$0xff]
      %v712 = vld [vmem:[#allocation14 + $0x48] sm:$0xff]
      %v713 = vld [vmem:[#allocation14 + $0x50] sm:$0xff]
      %v714 = vld [vmem:[#allocation14 + $0x58] sm:$0xff]
      %v715 = vld [vmem:[#allocation14 + $0x60] sm:$0xff]
      %v716 = vld [vmem:[#allocation14 + $0x68] sm:$0xff]
      %v717 = vld [vmem:[#allocation14 + $0x70] sm:$0xff]
      %v718 = vld [vmem:[#allocation14 + $0x78] sm:$0xff]
      %719 = vmatprep.subr.mxu0 0.0
      %720 = vmatpush1.msra.mxu0 %v718
      %721 = vmatprep.subr.mxu0 0.0
      %722 = vmatpush1.msra.mxu0 %v717
      %723 = vmatprep.subr.mxu0 0.0
      %724 = vmatpush1.msra.mxu0 %v716
      %725 = vmatprep.subr.mxu0 0.0
      %726 = vmatpush1.msra.mxu0 %v715
      %727 = vmatprep.subr.mxu0 0.0
      %728 = vmatpush1.msra.mxu0 %v714
      %729 = vmatprep.subr.mxu0 0.0
      %730 = vmatpush1.msra.mxu0 %v713
      %731 = vmatprep.subr.mxu0 0.0
      %732 = vmatpush1.msra.mxu0 %v712
      %733 = vmatprep.subr.mxu0 0.0
      %734 = vmatpush1.msra.mxu0 %v711
      %735 = vmatprep.subr.mxu0 0.0
      %736 = vmatpush1.msra.mxu0 %v710
      %737 = vmatprep.subr.mxu0 0.0
      %738 = vmatpush1.msra.mxu0 %v709
      %739 = vmatprep.subr.mxu0 0.0
      %740 = vmatpush1.msra.mxu0 %v708
      %741 = vmatprep.subr.mxu0 0.0
      %742 = vmatpush1.msra.mxu0 %v707
      %743 = vmatprep.subr.mxu0 0.0
      %744 = vmatpush1.msra.mxu0 %v706
      %745 = vmatprep.subr.mxu0 0.0
      %746 = vmatpush1.msra.mxu0 %v705
      %747 = vmatprep.subr.mxu0 0.0
      %748 = vmatpush1.msra.mxu0 %v704
      %749 = vmatprep.subr.mxu0 0.0
      %750 = vmatpush1.msra.mxu0 %v703
      %751 = vmatprep.subr.mxu0 0.0
      %752 = vmatpush2.msra.mxu0 0.0
      %753 = vmatprep.subr.mxu0 0.0
      %754 = vmatpush2.msra.mxu0 0.0
      %755 = vmatprep.subr.mxu0 0.0
      %756 = vmatpush2.msra.mxu0 0.0
      %757 = vmatprep.subr.mxu0 0.0
      %758 = vmatpush2.msra.mxu0 0.0
      %759 = vmatprep.subr.mxu0 0.0
      %760 = vmatpush2.msra.mxu0 0.0
      %761 = vmatprep.subr.mxu0 0.0
      %762 = vmatpush2.msra.mxu0 0.0
      %763 = vmatprep.subr.mxu0 0.0
      %764 = vmatpush2.msra.mxu0 0.0
      %765 = vmatprep.subr.mxu0 0.0
      %766 = vmatpush2.msra.mxu0 0.0
      %767 = vmatprep.subr.mxu0 0.0
      %768 = vmatpush2.msra.mxu0 0.0
      %769 = vmatprep.subr.mxu0 0.0
      %770 = vmatpush2.msra.mxu0 0.0
      %771 = vmatprep.subr.mxu0 0.0
      %772 = vmatpush2.msra.mxu0 0.0
      %773 = vmatprep.subr.mxu0 0.0
      %774 = vmatpush2.msra.mxu0 0.0
      %775 = vmatprep.subr.mxu0 0.0
      %776 = vmatpush2.msra.mxu0 0.0
      %777 = vmatprep.subr.mxu0 0.0
      %778 = vmatpush2.msra.mxu0 0.0
      %779 = vmatprep.subr.mxu0 0.0
      %780 = vmatpush2.msra.mxu0 0.0
      %781 = vmatprep.subr.mxu0 0.0
      %782 = vmatpush2.msra.mxu0 0.0
      %783 = vmatprep.mubr.f32.mxu0 0.0
      %784 = vmatmul.mubr.f32.gmra.mxu0 %v702
      %v785 = vpop.f32.mrf.mxu0
      %v786 = vadd.f32 0.0, %v785
      %v787 = vpop.f32.mrf.mxu0
      %788 = vdwg.mxu0
      %v790 = vrot.slane %v564, 2
      %v792 = vadd.f32 %v790, %v786
      %v793 = vtanh.pop %v792
      %v794 = vsub.f32 1.0, %v701
      %v795 = vmul.f32 %v794, %v555
      %v796 = vmul.f32 %v701, %v793
      %v797 = vadd.f32 %v795, %v796
    $region81: #{tpu_custom_call.1} parent=1 // loop_footer
      %s552 = sadd.s32 %s550, 1
    $region82: #{tpu_custom_call.1} parent=1 // loop_footer_branch
      %549 = sbr.rel target = $region78
    $region83: #{tpu_custom_call.1} parent=1 // loop_exit
      _
    %v798 = vld [vmem:[#allocation16] sm:$0xff]
    %v799 = vld [vmem:[#allocation16 + $0x8] sm:$0xff]
    %v800 = vld [vmem:[#allocation16 + $0x10] sm:$0xff]
    %v801 = vld [vmem:[#allocation16 + $0x18] sm:$0xff]
    %v802 = vld [vmem:[#allocation16 + $0x20] sm:$0xff]
    %v803 = vld [vmem:[#allocation16 + $0x28] sm:$0xff]
    %v804 = vld [vmem:[#allocation16 + $0x30] sm:$0xff]
    %v805 = vld [vmem:[#allocation16 + $0x38] sm:$0xff]
    %v806 = vld [vmem:[#allocation16 + $0x40] sm:$0xff]
    %v807 = vld [vmem:[#allocation16 + $0x48] sm:$0xff]
    %v808 = vld [vmem:[#allocation16 + $0x50] sm:$0xff]
    %v809 = vld [vmem:[#allocation16 + $0x58] sm:$0xff]
    %v810 = vld [vmem:[#allocation16 + $0x60] sm:$0xff]
    %v811 = vld [vmem:[#allocation16 + $0x68] sm:$0xff]
    %v812 = vld [vmem:[#allocation16 + $0x70] sm:$0xff]
    %v813 = vld [vmem:[#allocation16 + $0x78] sm:$0xff]
    %v814 = vld [vmem:[%s9] sm:$0x1]
    %815 = vmatprep.subr.mxu0 0.0
    %816 = vmatpush1.msra.mxu0 %v813
    %817 = vmatprep.subr.mxu0 0.0
    %818 = vmatpush1.msra.mxu0 %v812
    %819 = vmatprep.subr.mxu0 0.0
    %820 = vmatpush1.msra.mxu0 %v811
    %821 = vmatprep.subr.mxu0 0.0
    %822 = vmatpush1.msra.mxu0 %v810
    %823 = vmatprep.subr.mxu0 0.0
    %824 = vmatpush1.msra.mxu0 %v809
    %825 = vmatprep.subr.mxu0 0.0
    %826 = vmatpush1.msra.mxu0 %v808
    %827 = vmatprep.subr.mxu0 0.0
    %828 = vmatpush1.msra.mxu0 %v807
    %829 = vmatprep.subr.mxu0 0.0
    %830 = vmatpush1.msra.mxu0 %v806
    %831 = vmatprep.subr.mxu0 0.0
    %832 = vmatpush1.msra.mxu0 %v805
    %833 = vmatprep.subr.mxu0 0.0
    %834 = vmatpush1.msra.mxu0 %v804
    %835 = vmatprep.subr.mxu0 0.0
    %836 = vmatpush1.msra.mxu0 %v803
    %837 = vmatprep.subr.mxu0 0.0
    %838 = vmatpush1.msra.mxu0 %v802
    %839 = vmatprep.subr.mxu0 0.0
    %840 = vmatpush1.msra.mxu0 %v801
    %841 = vmatprep.subr.mxu0 0.0
    %842 = vmatpush1.msra.mxu0 %v800
    %843 = vmatprep.subr.mxu0 0.0
    %844 = vmatpush1.msra.mxu0 %v799
    %845 = vmatprep.subr.mxu0 0.0
    %846 = vmatpush1.msra.mxu0 %v798
    %847 = vmatprep.subr.mxu0 0.0
    %848 = vmatpush2.msra.mxu0 0.0
    %849 = vmatprep.subr.mxu0 0.0
    %850 = vmatpush2.msra.mxu0 0.0
    %851 = vmatprep.subr.mxu0 0.0
    %852 = vmatpush2.msra.mxu0 0.0
    %853 = vmatprep.subr.mxu0 0.0
    %854 = vmatpush2.msra.mxu0 0.0
    %855 = vmatprep.subr.mxu0 0.0
    %856 = vmatpush2.msra.mxu0 0.0
    %857 = vmatprep.subr.mxu0 0.0
    %858 = vmatpush2.msra.mxu0 0.0
    %859 = vmatprep.subr.mxu0 0.0
    %860 = vmatpush2.msra.mxu0 0.0
    %861 = vmatprep.subr.mxu0 0.0
    %862 = vmatpush2.msra.mxu0 0.0
    %863 = vmatprep.subr.mxu0 0.0
    %864 = vmatpush2.msra.mxu0 0.0
    %865 = vmatprep.subr.mxu0 0.0
    %866 = vmatpush2.msra.mxu0 0.0
    %867 = vmatprep.subr.mxu0 0.0
    %868 = vmatpush2.msra.mxu0 0.0
    %869 = vmatprep.subr.mxu0 0.0
    %870 = vmatpush2.msra.mxu0 0.0
    %871 = vmatprep.subr.mxu0 0.0
    %872 = vmatpush2.msra.mxu0 0.0
    %873 = vmatprep.subr.mxu0 0.0
    %874 = vmatpush2.msra.mxu0 0.0
    %875 = vmatprep.subr.mxu0 0.0
    %876 = vmatpush2.msra.mxu0 0.0
    %877 = vmatprep.subr.mxu0 0.0
    %878 = vmatpush2.msra.mxu0 0.0
    %879 = vmatprep.mubr.f32.mxu0 0.0
    %880 = vmatmul.mubr.f32.gmra.mxu0 %v555
    %v881 = vpop.f32.mrf.mxu0
    %v882 = vadd.f32 %v814, %v881
    %v883 = vpop.f32.mrf.mxu0
    %884 = vdwg.mxu0
    %v885 = vxor.u32 %v882, 2147483648
    %v886 = vmul.f32 %v885, 1.442695
    %v887 = vpow.pop %v886
    %v888 = vadd.f32 %v887, 1.0
    %v889 = vrcp.pop %v888
    %v890 = vmul.f32 1.0, %v889
    %891 = vst [vmem:[#allocation17] sm:$0x1] %v890
    // Predicated region
    $region84: #{tpu_custom_call.1} parent=1 // pred_check
      _
    $region85: #{tpu_custom_call.1} parent=1 // pred_check_branch
      %893 = sbr.rel (0) target = $region87
    $region86: #{tpu_custom_call.1} parent=1 // pred_region
      %s895 = ssub.s32 16, 16
      %896 = vsyncadd [#allocation7], %s895
      %s898 = sshll.u32 [#allocation17], 4
      %s899 = int_to_ptr.vmem [resolvable:$true] %s898
      %901 = dma.vmem_to_hbm [thread:$0]  %s899, 16, %s10, [#allocation7]
    $region87: #{tpu_custom_call.1} parent=1 // pred_fallthru
      _
    // Predicated region
    $region88: #{tpu_custom_call.1} parent=1 // pred_check
      _
    $region89: #{tpu_custom_call.1} parent=1 // pred_check_branch
      %903 = sbr.rel (0) target = $region91
    $region90: #{tpu_custom_call.1} parent=1 // pred_region
      %904 = dma.done [#allocation7], 16
    $region91: #{tpu_custom_call.1} parent=1 // pred_fallthru
      _
    %905 = vsyncpa [#allocation6], 1
    %906 = vsyncpa [#allocation9], 1
    %907 = vsyncpa [#allocation12], 1
    %908 = vsyncpa [#allocation15], 1
    %909 = vsyncpa [#allocation7], 1

</llo_original>
